<compile_context>
chip_gen: v5e
topology: v5e:2x2
jax: 0.10.0
libtpu: 0.0.40
codegen_flags: <defaults>
</compile_context>

<pallas_src>
import functools

import jax
import jax.numpy as jnp
from jax import lax
from jax.experimental import pallas as pl
from jax.experimental.pallas import tpu as pltpu


def _conv_bn_relu_kernel(x_ref, w_ref, shift_ref, o_ref, *, apply_relu):
    """One grid step = (batch n, cout-tile j, row-tile i).

    x_ref:     (1, Hp, Wp, Cin)   zero-padded NHWC input (bf16), full image of n
    w_ref:     (ks, ks*Cin, TC)   kw-folded HWIO weights (bf16, BN scale folded)
    shift_ref: (1, TC)            folded BN shift (f32)
    o_ref:     (1, TH, W, TC)     NHWC output tile (bf16)
    """
    _, TH, W, TC = o_ref.shape
    Cin = x_ref.shape[3]
    ks = w_ref.shape[0]

    h0 = pl.program_id(2) * TH
    if TH % 8 == 0:                      # alignment hint only when meaningful
        h0 = pl.multiple_of(h0, TH)

    # Load the per-tile halo slab once; every kh/kw tap is a value slice of it.
    slab = x_ref[0, pl.ds(h0, TH + ks - 1), :, :]           # (TH+ks-1, Wp, Cin)

    # Direct conv with kw folded into the contraction: one bf16 matmul per kh
    # with K = ks*Cin, accumulated into a single f32 chain (MRB-friendly on
    # v7x).  Accumulator tile is (TH*W, TC) f32 (bounded, stays resident).
    acc = jnp.zeros((TH * W, TC), jnp.float32)
    for kh in range(ks):                                    # ks is small & static
        rows = slab[kh:kh + TH]                             # (TH, Wp, Cin)
        patch = jnp.concatenate(
            [rows[:, kw:kw + W, :] for kw in range(ks)], axis=-1)  # (TH,W,ks*Cin)
        acc += jnp.dot(patch.reshape(TH * W, ks * Cin), w_ref[kh],
                       preferred_element_type=jnp.float32)

    y = acc + shift_ref[0]                                  # BN scale already in w
    if apply_relu:
        y = jnp.maximum(y, 0.0)                             # fused ReLU
    o_ref[0] = y.reshape(TH, W, TC).astype(o_ref.dtype)


def _pick_vmem_limit_bytes():
    """~96 MiB on 128-MiB parts (v5e/v6e), ~48 MiB on 64-MiB v7x."""
    cap = None
    try:
        info = pltpu.get_tpu_info()
        for name in ("vmem_capacity_bytes", "vmem_bytes", "vmem_size_bytes"):
            cap = getattr(info, name, None)
            if cap:
                break
    except Exception:
        cap = None
    if not cap:
        cap = 64 * 1024 * 1024                              # conservative (v7x)
    return int(min(cap * 3 // 4, 100 * 1024 * 1024))


def basic_conv2d(x_nchw, weight_oihw, gamma=None, beta=None,
                 running_mean=None, running_var=None, *,
                 eps=1e-5, norm=True, stride=1, dilation=1,
                 out_dtype=jnp.bfloat16):
    """Forward pass of BasicConv2d (stride=1, dilation=1, odd ks)."""
    if stride != 1 or dilation != 1:
        # TODO(synk): stride > 1 / dilation > 1 not implemented (module defaults).
        raise NotImplementedError("only stride=1, dilation=1 is supported")

    N, Cin, H, W = x_nchw.shape
    Cout, Cin_w, ks, ks2 = weight_oihw.shape
    assert ks == ks2 and Cin_w == Cin
    assert ks % 2 == 1, "pad=ks//2 is only shape-preserving for odd kernel sizes"
    pad = ks // 2

    # TODO(synk): for Cin < ~32 (stem convs) the lane dim is mostly padding; a
    # dedicated wrapper-side im2col (packing kh*kw*Cin toward 128 lanes) or a
    # lax.conv fallback would be faster for those layers.

    # ---- BN folding (inference mode) ----
    if norm:
        inv = gamma / jnp.sqrt(running_var + eps)
        scale, shift = inv, beta - running_mean * inv
    else:
        scale = jnp.ones((Cout,), jnp.float32)
        shift = jnp.zeros((Cout,), jnp.float32)

    # Cout lane padding only when it pays off (avoid 128/Cout FLOP inflation).
    if Cout >= 64:
        TC = 128
        CP = ((Cout + TC - 1) // TC) * TC
    else:
        TC = Cout
        CP = Cout
    n_ct = CP // TC

    # OIHW -> HWIO, fold BN scale into weights, pad Cout, fold kw into K.
    w = jnp.transpose(weight_oihw, (2, 3, 1, 0)).astype(jnp.float32)
    w = w * scale[None, None, None, :]
    w = jnp.pad(w, ((0, 0), (0, 0), (0, 0), (0, CP - Cout)))
    w_k = w.reshape(ks, ks * Cin, CP).astype(jnp.bfloat16)   # K index = kw*Cin+c
    shift_p = jnp.pad(shift.astype(jnp.float32), (0, CP - Cout)).reshape(1, CP)

    # Adaptive row tile: TH*W ~= 256 bounds the f32 accumulator to ~32 vregs.
    TH = max(1, min(H, -(-256 // W)))
    n_ht = -(-H // TH)
    HR = n_ht * TH                       # rows actually computed (tail sliced)

    # NCHW -> NHWC + bf16 + spatial zero-pad (incl. row-tail pad) fused.
    # TODO(synk): in an end-to-end NHWC/bf16 pipeline these transposes, the
    # jnp.pad, the Cout slice and the final transpose should disappear between
    # consecutive BasicConv2d layers (accept/emit NHWC, CP-padded channels).
    x_pad = jnp.pad(
        jnp.transpose(x_nchw, (0, 2, 3, 1)).astype(jnp.bfloat16),
        ((0, 0), (pad, pad + (HR - H)), (pad, pad), (0, 0)))
    Hp, Wp = HR + 2 * pad, W + 2 * pad

    kernel = functools.partial(_conv_bn_relu_kernel, apply_relu=norm)

    cost = pl.CostEstimate(
        flops=2 * N * HR * W * ks * ks * Cin * CP,
        transcendentals=0,
        bytes_accessed=(x_pad.size * 2 + w_k.size * 2 + shift_p.size * 4
                        + N * HR * W * CP * 2),
    )

    out_nhwc = pl.pallas_call(
        kernel,
        out_shape=jax.ShapeDtypeStruct((N, HR, W, CP), jnp.bfloat16),
        grid_spec=pltpu.PrefetchScalarGridSpec(
            num_scalar_prefetch=0,
            grid=(N, n_ct, n_ht),
            in_specs=[
                # Full padded image of batch n (block index constant over j,i ->
                # one DMA per batch, no re-fetch across the inner grid axes).
                # TODO(synk): for very large activations on v7x (64 MiB VMEM)
                # switch this to a halo row-tile (TH+ks-1 rows) input block.
                pl.BlockSpec((1, Hp, Wp, Cin), lambda n, j, i: (n, 0, 0, 0)),
                pl.BlockSpec((ks, ks * Cin, TC), lambda n, j, i: (0, 0, j)),
                pl.BlockSpec((1, TC), lambda n, j, i: (0, j)),
            ],
            out_specs=pl.BlockSpec((1, TH, W, TC),
                                   lambda n, j, i: (n, i, 0, j)),
        ),
        compiler_params=pltpu.CompilerParams(
            dimension_semantics=("parallel", "parallel", "parallel"),
            vmem_limit_bytes=_pick_vmem_limit_bytes(),
        ),
        cost_estimate=cost,
    )(x_pad, w_k, shift_p)

    # Drop the row-tail / Cout lane padding, back to NCHW.
    out = jnp.transpose(out_nhwc[:, :H, :, :Cout], (0, 3, 1, 2))
    return out.astype(out_dtype)


# ----------------------------- references ----------------------------------
def _module_reference(x, w, gamma, beta, mean, var, *, eps=1e-5, norm=True):
    """Exact f32 semantics of the PyTorch module (Conv + BN(eval) + ReLU)."""
    pad = w.shape[2] // 2
    y = lax.conv_general_dilated(x, w, (1, 1), ((pad, pad), (pad, pad)),
                                 dimension_numbers=('NCHW', 'OIHW', 'NCHW'))
    if norm:
        inv = gamma / jnp.sqrt(var + eps)
        y = (y - mean[None, :, None, None]) * inv[None, :, None, None] \
            + beta[None, :, None, None]
        y = jnp.maximum(y, 0.0)
    return y


def _bf16_matched_reference(x, w, gamma, beta, mean, var, *, eps=1e-5, norm=True):
    """Same math as the kernel: bf16-rounded x & scale-folded weights, f32 acc,
    bf16-rounded output."""
    pad = w.shape[2] // 2
    Cout = w.shape[0]
    if norm:
        inv = gamma / jnp.sqrt(var + eps)
        scale, shift = inv, beta - mean * inv
    else:
        scale = jnp.ones((Cout,), jnp.float32)
        shift = jnp.zeros((Cout,), jnp.float32)
    wf = (w * scale[:, None, None, None]).astype(jnp.bfloat16).astype(jnp.float32)
    xq = x.astype(jnp.bfloat16).astype(jnp.float32)
    y = lax.conv_general_dilated(xq, wf, (1, 1), ((pad, pad), (pad, pad)),
                                 dimension_numbers=('NCHW', 'OIHW', 'NCHW'))
    y = y + shift[None, :, None, None]
    if norm:
        y = jnp.maximum(y, 0.0)
    return y.astype(jnp.bfloat16).astype(jnp.float32)


def _make_inputs(key, N, Cin, H, W, Cout, ks):
    kx, kw, kg, kb, km, kv = jax.random.split(key, 6)
    x = jax.random.normal(kx, (N, Cin, H, W), jnp.float32)
    weight = jax.random.normal(kw, (Cout, Cin, ks, ks), jnp.float32) * 0.1
    gamma = 1.0 + 0.1 * jax.random.normal(kg, (Cout,), jnp.float32)
    beta = 0.1 * jax.random.normal(kb, (Cout,), jnp.float32)
    mean = 0.1 * jax.random.normal(km, (Cout,), jnp.float32)
    var = jnp.abs(jax.random.normal(kv, (Cout,), jnp.float32)) + 0.5
    return x, weight, gamma, beta, mean, var


if __name__ == "__main__":
    key = jax.random.PRNGKey(0)
    k1, k2 = jax.random.split(key)

    # --- Config 1: BasicConv2d(in_c=4, out_c=8, ks=3) -- small-Cout path ----
    N, Cin, H, W, Cout, ks = 2, 4, 16, 16, 8, 3
    x, weight, gamma, beta, mean, var = _make_inputs(k1, N, Cin, H, W, Cout, ks)

    out = basic_conv2d(x, weight, gamma, beta, mean, var)       # Conv+BN+ReLU
    out = jax.block_until_ready(out)
    assert out.shape == (N, Cout, H, W), out.shape
    out32 = out.astype(jnp.float32)

    ref_exact = _bf16_matched_reference(x, weight, gamma, beta, mean, var)
    assert jnp.allclose(out32, ref_exact, atol=2e-2, rtol=2e-2), \
        float(jnp.max(jnp.abs(out32 - ref_exact)))
    ref_f32 = _module_reference(x, weight, gamma, beta, mean, var)
    assert jnp.allclose(out32, ref_f32, atol=1.5e-1, rtol=1.5e-1), \
        float(jnp.max(jnp.abs(out32 - ref_f32)))

    # norm=False path: plain Conv2d (no BN, no ReLU -- matches the module).
    out_nn = basic_conv2d(x, weight, norm=False)
    out_nn = jax.block_until_ready(out_nn).astype(jnp.float32)
    ref_nn = _bf16_matched_reference(x, weight, None, None, None, None,
                                     norm=False)
    assert jnp.allclose(out_nn, ref_nn, atol=2e-2, rtol=2e-2), \
        float(jnp.max(jnp.abs(out_nn - ref_nn)))

    # --- Config 2: larger channels, H % TH != 0 (row-tail), multi cout-tile --
    N2, Cin2, H2, W2, Cout2 = 2, 32, 21, 24, 160
    x2, w2, g2, b2, m2, v2 = _make_inputs(k2, N2, Cin2, H2, W2, Cout2, ks)
    out2 = basic_conv2d(x2, w2, g2, b2, m2, v2)
    out2 = jax.block_until_ready(out2).astype(jnp.float32)
    assert out2.shape == (N2, Cout2, H2, W2), out2.shape
    ref2 = _bf16_matched_reference(x2, w2, g2, b2, m2, v2)
    assert jnp.allclose(out2, ref2, atol=3e-2, rtol=2e-2), \
        float(jnp.max(jnp.abs(out2 - ref2)))
    ref2_f32 = _module_reference(x2, w2, g2, b2, m2, v2)
    assert jnp.allclose(out2, ref2_f32, atol=1.5e-1, rtol=1.5e-1), \
        float(jnp.max(jnp.abs(out2 - ref2_f32)))

    print("KERNEL_OK")
</pallas_src>

<mosaic_0001>
module attributes {stable_mosaic.version = 11 : i64} {
  func.func @_conv_bn_relu_kernel(%arg0: i32, %arg1: i32, %arg2: i32, %arg3: memref<1x18x18x4xbf16, #tpu.memory_space<vmem>>, %arg4: memref<3x12x8xbf16, #tpu.memory_space<vmem>>, %arg5: memref<1x8xf32, #tpu.memory_space<vmem>>, %arg6: memref<1x16x16x8xbf16, #tpu.memory_space<vmem>>) attributes {dimension_semantics = [#tpu.dimension_semantics<parallel>, #tpu.dimension_semantics<parallel>, #tpu.dimension_semantics<parallel>], iteration_bounds = array<i64: 2, 1, 1>, scalar_prefetch = 0 : i64, scratch_operands = 0 : i64, tpu.core_type = #tpu.core_type<tc>, window_params = [{transform_indices = @transform_0, window_bounds = array<i64: 1, 18, 18, 4>}, {transform_indices = @transform_1, window_bounds = array<i64: 3, 12, 8>}, {transform_indices = @transform_2, window_bounds = array<i64: 1, 8>}, {transform_indices = @transform_3, window_bounds = array<i64: 1, 16, 16, 8>}]} {
    %c16_i32 = arith.constant 16 : i32
    %0 = arith.muli %arg2, %c16_i32 : i32
    %1 = tpu.assume_multiple %0, 16 : i32
    %c0 = arith.constant 0 : index
    %2 = arith.index_cast %1 : i32 to index
    %c0_0 = arith.constant 0 : index
    %c0_1 = arith.constant 0 : index
    %3 = vector.load %arg3[%c0, %2, %c0_0, %c0_1] : memref<1x18x18x4xbf16, #tpu.memory_space<vmem>>, vector<1x18x18x4xbf16>
    %4 = vector.shape_cast %3 : vector<1x18x18x4xbf16> to vector<18x18x4xbf16>
    %cst = arith.constant 0.000000e+00 : f32
    %5 = vector.broadcast %cst : f32 to vector<256x8xf32>
    %6 = vector.extract_strided_slice %4 {offsets = [0, 0, 0], sizes = [16, 18, 4], strides = [1, 1, 1]} : vector<18x18x4xbf16> to vector<16x18x4xbf16>
    %7 = vector.extract_strided_slice %6 {offsets = [0, 0, 0], sizes = [16, 16, 4], strides = [1, 1, 1]} : vector<16x18x4xbf16> to vector<16x16x4xbf16>
    %8 = vector.extract_strided_slice %6 {offsets = [0, 1, 0], sizes = [16, 16, 4], strides = [1, 1, 1]} : vector<16x18x4xbf16> to vector<16x16x4xbf16>
    %9 = vector.extract_strided_slice %6 {offsets = [0, 2, 0], sizes = [16, 16, 4], strides = [1, 1, 1]} : vector<16x18x4xbf16> to vector<16x16x4xbf16>
    %10 = tpu.concatenate %7, %8, %9 in 2 : vector<16x16x4xbf16>, vector<16x16x4xbf16>, vector<16x16x4xbf16> -> vector<16x16x12xbf16>
    %11 = vector.shape_cast %10 : vector<16x16x12xbf16> to vector<256x12xbf16>
    %c0_2 = arith.constant 0 : index
    %c0_3 = arith.constant 0 : index
    %c0_4 = arith.constant 0 : index
    %12 = vector.load %arg4[%c0_2, %c0_3, %c0_4] : memref<3x12x8xbf16, #tpu.memory_space<vmem>>, vector<1x12x8xbf16>
    %13 = vector.shape_cast %12 : vector<1x12x8xbf16> to vector<12x8xbf16>
    %cst_5 = arith.constant dense<0.000000e+00> : vector<256x8xf32>
    %14 = tpu.matmul %11, %13, %cst_5 {dimension_numbers = #tpu.dot_dimension_numbers<[1], [0], [0], [1], [0, 0, 1, 1], [], []>} : vector<256x12xbf16>, vector<12x8xbf16>, vector<256x8xf32> -> vector<256x8xf32>
    %15 = arith.addf %5, %14 : vector<256x8xf32>
    %16 = vector.extract_strided_slice %4 {offsets = [1, 0, 0], sizes = [16, 18, 4], strides = [1, 1, 1]} : vector<18x18x4xbf16> to vector<16x18x4xbf16>
    %17 = vector.extract_strided_slice %16 {offsets = [0, 0, 0], sizes = [16, 16, 4], strides = [1, 1, 1]} : vector<16x18x4xbf16> to vector<16x16x4xbf16>
    %18 = vector.extract_strided_slice %16 {offsets = [0, 1, 0], sizes = [16, 16, 4], strides = [1, 1, 1]} : vector<16x18x4xbf16> to vector<16x16x4xbf16>
    %19 = vector.extract_strided_slice %16 {offsets = [0, 2, 0], sizes = [16, 16, 4], strides = [1, 1, 1]} : vector<16x18x4xbf16> to vector<16x16x4xbf16>
    %20 = tpu.concatenate %17, %18, %19 in 2 : vector<16x16x4xbf16>, vector<16x16x4xbf16>, vector<16x16x4xbf16> -> vector<16x16x12xbf16>
    %21 = vector.shape_cast %20 : vector<16x16x12xbf16> to vector<256x12xbf16>
    %c1 = arith.constant 1 : index
    %c0_6 = arith.constant 0 : index
    %c0_7 = arith.constant 0 : index
    %22 = vector.load %arg4[%c1, %c0_6, %c0_7] : memref<3x12x8xbf16, #tpu.memory_space<vmem>>, vector<1x12x8xbf16>
    %23 = vector.shape_cast %22 : vector<1x12x8xbf16> to vector<12x8xbf16>
    %cst_8 = arith.constant dense<0.000000e+00> : vector<256x8xf32>
    %24 = tpu.matmul %21, %23, %cst_8 {dimension_numbers = #tpu.dot_dimension_numbers<[1], [0], [0], [1], [0, 0, 1, 1], [], []>} : vector<256x12xbf16>, vector<12x8xbf16>, vector<256x8xf32> -> vector<256x8xf32>
    %25 = arith.addf %15, %24 : vector<256x8xf32>
    %26 = vector.extract_strided_slice %4 {offsets = [2, 0, 0], sizes = [16, 18, 4], strides = [1, 1, 1]} : vector<18x18x4xbf16> to vector<16x18x4xbf16>
    %27 = vector.extract_strided_slice %26 {offsets = [0, 0, 0], sizes = [16, 16, 4], strides = [1, 1, 1]} : vector<16x18x4xbf16> to vector<16x16x4xbf16>
    %28 = vector.extract_strided_slice %26 {offsets = [0, 1, 0], sizes = [16, 16, 4], strides = [1, 1, 1]} : vector<16x18x4xbf16> to vector<16x16x4xbf16>
    %29 = vector.extract_strided_slice %26 {offsets = [0, 2, 0], sizes = [16, 16, 4], strides = [1, 1, 1]} : vector<16x18x4xbf16> to vector<16x16x4xbf16>
    %30 = tpu.concatenate %27, %28, %29 in 2 : vector<16x16x4xbf16>, vector<16x16x4xbf16>, vector<16x16x4xbf16> -> vector<16x16x12xbf16>
    %31 = vector.shape_cast %30 : vector<16x16x12xbf16> to vector<256x12xbf16>
    %c2 = arith.constant 2 : index
    %c0_9 = arith.constant 0 : index
    %c0_10 = arith.constant 0 : index
    %32 = vector.load %arg4[%c2, %c0_9, %c0_10] : memref<3x12x8xbf16, #tpu.memory_space<vmem>>, vector<1x12x8xbf16>
    %33 = vector.shape_cast %32 : vector<1x12x8xbf16> to vector<12x8xbf16>
    %cst_11 = arith.constant dense<0.000000e+00> : vector<256x8xf32>
    %34 = tpu.matmul %31, %33, %cst_11 {dimension_numbers = #tpu.dot_dimension_numbers<[1], [0], [0], [1], [0, 0, 1, 1], [], []>} : vector<256x12xbf16>, vector<12x8xbf16>, vector<256x8xf32> -> vector<256x8xf32>
    %35 = arith.addf %25, %34 : vector<256x8xf32>
    %c0_12 = arith.constant 0 : index
    %c0_13 = arith.constant 0 : index
    %36 = vector.load %arg5[%c0_12, %c0_13] : memref<1x8xf32, #tpu.memory_space<vmem>>, vector<1x8xf32>
    %37 = vector.shape_cast %36 : vector<1x8xf32> to vector<8xf32>
    %38 = vector.shape_cast %37 : vector<8xf32> to vector<1x8xf32>
    %39 = vector.broadcast %38 : vector<1x8xf32> to vector<256x8xf32>
    %40 = arith.addf %35, %39 : vector<256x8xf32>
    %cst_14 = arith.constant 0.000000e+00 : f32
    %41 = vector.broadcast %cst_14 : f32 to vector<256x8xf32>
    %42 = arith.maximumf %40, %41 : vector<256x8xf32>
    %43 = vector.shape_cast %42 : vector<256x8xf32> to vector<16x16x8xf32>
    %44 = arith.truncf %43 : vector<16x16x8xf32> to vector<16x16x8xbf16>
    %c0_15 = arith.constant 0 : index
    %c0_16 = arith.constant 0 : index
    %c0_17 = arith.constant 0 : index
    %c0_18 = arith.constant 0 : index
    %45 = vector.load %arg6[%c0_15, %c0_16, %c0_17, %c0_18] : memref<1x16x16x8xbf16, #tpu.memory_space<vmem>>, vector<1x16x16x8xbf16>
    %46 = vector.shape_cast %45 : vector<1x16x16x8xbf16> to vector<16x16x8xbf16>
    %47 = vector.shape_cast %44 : vector<16x16x8xbf16> to vector<1x16x16x8xbf16>
    tpu.vector_store %arg6[%c0_15, %c0_16, %c0_17, %c0_18], %47 {strides = array<i32>} : memref<1x16x16x8xbf16, #tpu.memory_space<vmem>>, vector<1x16x16x8xbf16>,
    return
  }
  func.func @transform_0(%arg0: i32, %arg1: i32, %arg2: i32) -> (i32, i32, i32, i32) {
    %c0_i32 = arith.constant 0 : i32
    %c0_i32_0 = arith.constant 0 : i32
    %c0_i32_1 = arith.constant 0 : i32
    %c0_i32_2 = arith.constant 0 : i32
    return %arg0, %c0_i32, %c0_i32_0, %c0_i32_1 : i32, i32, i32, i32
  }
  func.func @transform_1(%arg0: i32, %arg1: i32, %arg2: i32) -> (i32, i32, i32) {
    %c0_i32 = arith.constant 0 : i32
    %c0_i32_0 = arith.constant 0 : i32
    %c0_i32_1 = arith.constant 0 : i32
    return %c0_i32, %c0_i32_0, %arg1 : i32, i32, i32
  }
  func.func @transform_2(%arg0: i32, %arg1: i32, %arg2: i32) -> (i32, i32) {
    %c0_i32 = arith.constant 0 : i32
    %c0_i32_0 = arith.constant 0 : i32
    return %c0_i32, %arg1 : i32, i32
  }
  func.func @transform_3(%arg0: i32, %arg1: i32, %arg2: i32) -> (i32, i32, i32, i32) {
    %c0_i32 = arith.constant 0 : i32
    %c0_i32_0 = arith.constant 0 : i32
    return %arg0, %arg2, %c0_i32, %arg1 : i32, i32, i32, i32
  }
}

</mosaic_0001>

<llo_original>
// kernel: tpu_custom_call.1
$region0: #{tpu_custom_call.1}
  #allocation0 [shape = 'u32[]', space=smem, size = 0x4, offset = 0x4, fixed_abs, tag = 'smem constant byte address 0x4 - core index']
  #allocation1 [shape = 'u32[72,128]{1,0:T(1,128)}', space=vmem, size = 0x9000, scoped, tag = 'internal scratch']
  %s0 = inlined_call_operand.vmem [shape: bf16[2,18,18,4], index: 0, kind: input, shape index: {}]
  %s1 = inlined_call_operand.vmem [shape: bf16[3,12,8], index: 1, kind: input, shape index: {}]
  %s2 = inlined_call_operand.vmem [shape: f32[1,8], index: 2, kind: input, shape index: {}]
  %s3 = inlined_call_operand.vmem [shape: bf16[2,16,16,8], index: 3, kind: output, shape index: {}]
  %s4 = sld [smem:[#allocation0]]
  $region45: #{tpu_custom_call.1} parent=0
    _
  %s6 = ssub.s32 1, %s4
  %s7 = scalar_select 0, %s6, %s4
  loop: start=0, step=1, limit=4
  $region2: #{tpu_custom_call.1} parent=0 // loop_pre_header
    _
  $region3: #{tpu_custom_call.1} parent=0 // loop_header
    %s9 = sphi 0, %s13
    %p10 = scmp.ge.s32.totalorder %s9, 4
    %s16 = sphi 0, %s35
    %s17 = sphi 0, %s31
    %s18 = sphi 0, %s27
    %s19 = sphi 0, %s16
    %s20 = sphi 0, %s17
    %s21 = sphi 0, %s18
    %s22 = sphi 0, %s19
    %s23 = sphi 0, %s20
    %s24 = sphi 0, %s21
    %s38 = sphi 0, %s40
    %s41 = sphi 0, %s38
    %s42 = sphi 0, %s41
    %s58 = sphi 0, %s42
    %s64 = sphi 0, %s66
    %s67 = sphi 0, %s64
    %s68 = sphi 0, %s67
    %s84 = sphi 0, %s68
    %s90 = sphi 0, %s92
    %s93 = sphi 0, %s90
    %s94 = sphi 0, %s93
    %s110 = sphi 0, %s94
    %s120 = sphi 0, %s122
    %s123 = sphi 0, %s120
    %s124 = sphi 0, %s123
    %s140 = sphi 0, %s124
  $region4: #{tpu_custom_call.1} parent=0 // loop_header_branch
    %12 = sbr.rel (%p10) target = $region8
  $region5: #{tpu_custom_call.1} parent=0 // loop_body
    %s14 = ssub.s32 %s9, 1
    %s15 = ssub.s32 %s9, 2
    %s25 = sadd.s32 1, %s18
    %p26 = scmp.ge.s32.totalorder %s25, 1
    %s27 = scalar_select %p26, 0, %s25
    %s28 = sadd.s32 1, %s17
    %s29 = scalar_select %p26, %s28, %s17
    %p30 = scmp.ge.s32.totalorder %s29, 1
    %s31 = scalar_select %p30, 0, %s29
    %s32 = sadd.s32 1, %s16
    %s33 = scalar_select %p30, %s32, %s16
    %p34 = scmp.ge.s32.totalorder %s33, 2
    %s35 = scalar_select %p34, 0, %s33
    %s36 = ssub.s32 %s16, %s35
    %p37 = scmp.eq.s32.totalorder %s36, 0
    %s39 = sadd.s32 %s38, 1
    %s40 = scalar_select %p37, %s38, %s39
    %p43 = pneg %p37
    %p44 = scmp.eq.s32.totalorder %s9, 1
    %p45 = por %p43, %p44
    %p46 = scmp.ne.s32.totalorder %s38, %s41
    %p47 = scmp.eq.s32.totalorder %s9, 0
    %p48 = por %p46, %p47
    %p49 = scmp.ne.s32.totalorder %s38, %s41
    %p50 = scmp.eq.s32.totalorder %s14, 1
    %p51 = por %p49, %p50
    %p52 = scmp.ne.s32.totalorder %s41, %s42
    %p53 = scmp.eq.s32.totalorder %s14, 0
    %p54 = por %p52, %p53
    %p55 = scmp.ne.s32.totalorder %s41, %s42
    %p56 = scmp.eq.s32.totalorder %s15, 1
    %p57 = por %p55, %p56
    %p59 = scmp.ne.s32.totalorder %s42, %s58
    %p60 = scmp.eq.s32.totalorder %s15, 0
    %p61 = por %p59, %p60
    %s62 = ssub.s32 %s17, %s31
    %p63 = scmp.eq.s32.totalorder %s62, 0
    %s65 = sadd.s32 %s64, 1
    %s66 = scalar_select %p63, %s64, %s65
    %p69 = pneg %p63
    %p70 = scmp.eq.s32.totalorder %s9, 1
    %p71 = por %p69, %p70
    %p72 = scmp.ne.s32.totalorder %s64, %s67
    %p73 = scmp.eq.s32.totalorder %s9, 0
    %p74 = por %p72, %p73
    %p75 = scmp.ne.s32.totalorder %s64, %s67
    %p76 = scmp.eq.s32.totalorder %s14, 1
    %p77 = por %p75, %p76
    %p78 = scmp.ne.s32.totalorder %s67, %s68
    %p79 = scmp.eq.s32.totalorder %s14, 0
    %p80 = por %p78, %p79
    %p81 = scmp.ne.s32.totalorder %s67, %s68
    %p82 = scmp.eq.s32.totalorder %s15, 1
    %p83 = por %p81, %p82
    %p85 = scmp.ne.s32.totalorder %s68, %s84
    %p86 = scmp.eq.s32.totalorder %s15, 0
    %p87 = por %p85, %p86
    %s88 = ssub.s32 %s17, %s31
    %p89 = scmp.eq.s32.totalorder %s88, 0
    %s91 = sadd.s32 %s90, 1
    %s92 = scalar_select %p89, %s90, %s91
    %p95 = pneg %p89
    %p96 = scmp.eq.s32.totalorder %s9, 1
    %p97 = por %p95, %p96
    %p98 = scmp.ne.s32.totalorder %s90, %s93
    %p99 = scmp.eq.s32.totalorder %s9, 0
    %p100 = por %p98, %p99
    %p101 = scmp.ne.s32.totalorder %s90, %s93
    %p102 = scmp.eq.s32.totalorder %s14, 1
    %p103 = por %p101, %p102
    %p104 = scmp.ne.s32.totalorder %s93, %s94
    %p105 = scmp.eq.s32.totalorder %s14, 0
    %p106 = por %p104, %p105
    %p107 = scmp.ne.s32.totalorder %s93, %s94
    %p108 = scmp.eq.s32.totalorder %s15, 1
    %p109 = por %p107, %p108
    %p111 = scmp.ne.s32.totalorder %s94, %s110
    %p112 = scmp.eq.s32.totalorder %s15, 0
    %p113 = por %p111, %p112
    %s114 = ssub.s32 %s16, %s35
    %s115 = ssub.s32 %s18, %s27
    %s116 = sor.u32 %s114, %s115
    %s117 = ssub.s32 %s17, %s31
    %s118 = sor.u32 %s116, %s117
    %p119 = scmp.eq.s32.totalorder %s118, 0
    %s121 = sadd.s32 %s120, 1
    %s122 = scalar_select %p119, %s120, %s121
    %p125 = pneg %p119
    %p126 = scmp.eq.s32.totalorder %s9, 1
    %p127 = por %p125, %p126
    %p128 = scmp.ne.s32.totalorder %s120, %s123
    %p129 = scmp.eq.s32.totalorder %s9, 0
    %p130 = por %p128, %p129
    %p131 = scmp.ne.s32.totalorder %s120, %s123
    %p132 = scmp.eq.s32.totalorder %s14, 1
    %p133 = por %p131, %p132
    %p134 = scmp.ne.s32.totalorder %s123, %s124
    %p135 = scmp.eq.s32.totalorder %s14, 0
    %p136 = por %p134, %p135
    %p137 = scmp.ne.s32.totalorder %s123, %s124
    %p138 = scmp.eq.s32.totalorder %s15, 1
    %p139 = por %p137, %p138
    %p141 = scmp.ne.s32.totalorder %s124, %s140
    %p142 = scmp.eq.s32.totalorder %s15, 0
    %p143 = por %p141, %p142
    %p144 = scmp.le.s32.totalorder 1, %s9
    %p145 = scmp.lt.s32.totalorder %s9, 3
    %p146 = pnand %p144, %p145
    %p147 = pneg %p146
    // Predicated region
    $region9: #{tpu_custom_call.1} parent=5 // pred_check
      _
    $region10: #{tpu_custom_call.1} parent=5 // pred_check_branch
      %149 = sbr.rel (%p146) target = $region12
    $region11: #{tpu_custom_call.1} parent=5 // pred_region
      %s150 = ssub.s32 %s9, 1
      // Predicated region
      $region13: #{tpu_custom_call.1} parent=11 // pred_check
        %p151 = pneg %p80
      $region14: #{tpu_custom_call.1} parent=11 // pred_check_branch
        %153 = sbr.rel (%p151) target = $region16
      $region15: #{tpu_custom_call.1} parent=11 // pred_region
        %p154 = scmp.lt.s32.totalorder %s20, 0
        %s155 = scalar_select %p154, %s20, 0
        %s156 = smul.addr %s155, 4
        %s157 = scalar_lea.vmem %s1, %s156
      $region16: #{tpu_custom_call.1} parent=11 // pred_fallthru
        _
      // Predicated region
      $region17: #{tpu_custom_call.1} parent=11 // pred_check
        %p158 = pneg %p106
      $region18: #{tpu_custom_call.1} parent=11 // pred_check_branch
        %160 = sbr.rel (%p158) target = $region20
      $region19: #{tpu_custom_call.1} parent=11 // pred_region
        %p161 = scmp.lt.s32.totalorder %s20, 0
        %s162 = scalar_select %p161, %s20, 0
        %s163 = scalar_lea.vmem %s2, %s162
      $region20: #{tpu_custom_call.1} parent=11 // pred_fallthru
        _
    $region12: #{tpu_custom_call.1} parent=5 // pred_fallthru
      _
    %p164 = scmp.lt.s32.totalorder %s9, 2
    // Predicated region
    $region21: #{tpu_custom_call.1} parent=5 // pred_check
      %p165 = pneg %p164
    $region22: #{tpu_custom_call.1} parent=5 // pred_check_branch
      %167 = sbr.rel (%p165) target = $region24
    $region23: #{tpu_custom_call.1} parent=5 // pred_region
      // Predicated region
      $region25: #{tpu_custom_call.1} parent=23 // pred_check
        %p168 = pneg %p48
      $region26: #{tpu_custom_call.1} parent=23 // pred_check_branch
        %170 = sbr.rel (%p168) target = $region28
      $region27: #{tpu_custom_call.1} parent=23 // pred_region
        %p171 = scmp.lt.s32.totalorder %s16, 1
        %s172 = scalar_select %p171, %s16, 1
        %s173 = smul.addr %s172, 54
        %s174 = smul.addr %s173, 4
        %s175 = scalar_lea.vmem %s0, %s174
      $region28: #{tpu_custom_call.1} parent=23 // pred_fallthru
        _
    $region24: #{tpu_custom_call.1} parent=5 // pred_fallthru
      _
    %p176 = scmp.le.s32.totalorder 1, %s9
    %p177 = scmp.lt.s32.totalorder %s9, 3
    %p178 = pnand %p176, %p177
    %p179 = pneg %p178
    // Predicated region
    $region29: #{tpu_custom_call.1} parent=5 // pred_check
      _
    $region30: #{tpu_custom_call.1} parent=5 // pred_check_branch
      %181 = sbr.rel (%p178) target = $region32
    $region31: #{tpu_custom_call.1} parent=5 // pred_region
      %s182 = ssub.s32 %s9, 1
      %p183 = scmp.lt.s32.totalorder %s19, 1
      %s184 = scalar_select %p183, %s19, 1
      %s185 = smul.addr %s184, 54
      %s186 = smul.addr %s185, 4
      %s187 = scalar_lea.vmem %s0, %s186
      %p188 = pneg %p54
      %p189 = pneg %p51
      %p190 = scmp.lt.s32.totalorder %s20, 0
      %s191 = scalar_select %p190, %s20, 0
      %s192 = smul.addr %s191, 4
      %s193 = scalar_lea.vmem %s1, %s192
      %p194 = pneg %p80
      %p195 = pneg %p77
      %p196 = scmp.lt.s32.totalorder %s20, 0
      %s197 = scalar_select %p196, %s20, 0
      %s198 = scalar_lea.vmem %s2, %s197
      %p199 = pneg %p106
      %p200 = pneg %p103
      %p201 = pneg %p136
      %p202 = pneg %p133
      %s203 = smul.u32 16, %s21
      %p204 = scmp.lt.s32.totalorder %s19, 1
      %s205 = scalar_select %p204, %s19, 1
      %p206 = scmp.lt.s32.totalorder %s203, 15
      %s207 = scalar_select %p206, %s203, 15
      %p208 = scmp.lt.s32.totalorder %s20, 0
      %s209 = scalar_select %p208, %s20, 0
      %s210 = smul.addr %s207, 2
      %s211 = sadd.s32 %s209, %s210
      %s212 = smul.addr %s205, 32
      %s213 = sadd.s32 %s211, %s212
      %s214 = smul.addr %s213, 4
      %s215 = scalar_lea.vmem %s3, %s214
      %p216 = scmp.lt.s32.totalorder %s19, 1
      %s217 = scalar_select %p216, %s19, 1
      %s218 = smul.addr %s217, 54
      %s219 = smul.addr %s218, 4
      %s220 = scalar_lea.vmem %s0, %s219
      %p221 = scmp.lt.s32.totalorder %s20, 0
      %s222 = scalar_select %p221, %s20, 0
      %s223 = smul.addr %s222, 4
      %s224 = scalar_lea.vmem %s1, %s223
      %p225 = scmp.lt.s32.totalorder %s20, 0
      %s226 = scalar_select %p225, %s20, 0
      %s227 = scalar_lea.vmem %s2, %s226
      %s228 = smul.u32 16, %s21
      %p229 = scmp.lt.s32.totalorder %s19, 1
      %s230 = scalar_select %p229, %s19, 1
      %p231 = scmp.lt.s32.totalorder %s228, 15
      %s232 = scalar_select %p231, %s228, 15
      %p233 = scmp.lt.s32.totalorder %s20, 0
      %s234 = scalar_select %p233, %s20, 0
      %s235 = smul.addr %s232, 2
      %s236 = sadd.s32 %s234, %s235
      %s237 = smul.addr %s230, 32
      %s238 = sadd.s32 %s236, %s237
      %s239 = smul.addr %s238, 4
      %s240 = scalar_lea.vmem %s3, %s239
      %s241 = smul.u32 16, %s21
      %s243 = smul.u32 %s21, 16
      %s244 = smul.u32 %s243, 3
      %s245 = smul.addr %s244, 4
      %s246 = scalar_lea.vmem %s220, %s245
      %v247 = vld [vmem:[%s246] sm:$0xf]
      %v248 = vld [vmem:[%s246 + $0x4] sm:$0xf]
      %v249 = vld [vmem:[%s246 + $0x8] sm:$0x1]
      %v250 = vld [vmem:[%s246 + $0xc] sm:$0xf]
      %v251 = vld [vmem:[%s246 + $0x10] sm:$0xf]
      %v252 = vld [vmem:[%s246 + $0x14] sm:$0x1]
      %v253 = vld [vmem:[%s246 + $0x18] sm:$0xf]
      %v254 = vld [vmem:[%s246 + $0x1c] sm:$0xf]
      %v255 = vld [vmem:[%s246 + $0x20] sm:$0x1]
      %v256 = vld [vmem:[%s246 + $0x24] sm:$0xf]
      %v257 = vld [vmem:[%s246 + $0x28] sm:$0xf]
      %v258 = vld [vmem:[%s246 + $0x2c] sm:$0x1]
      %v259 = vld [vmem:[%s246 + $0x30] sm:$0xf]
      %v260 = vld [vmem:[%s246 + $0x34] sm:$0xf]
      %v261 = vld [vmem:[%s246 + $0x38] sm:$0x1]
      %v262 = vld [vmem:[%s246 + $0x3c] sm:$0xf]
      %v263 = vld [vmem:[%s246 + $0x40] sm:$0xf]
      %v264 = vld [vmem:[%s246 + $0x44] sm:$0x1]
      %v265 = vld [vmem:[%s246 + $0x48] sm:$0xf]
      %v266 = vld [vmem:[%s246 + $0x4c] sm:$0xf]
      %v267 = vld [vmem:[%s246 + $0x50] sm:$0x1]
      %v268 = vld [vmem:[%s246 + $0x54] sm:$0xf]
      %v269 = vld [vmem:[%s246 + $0x58] sm:$0xf]
      %v270 = vld [vmem:[%s246 + $0x5c] sm:$0x1]
      %v271 = vld [vmem:[%s246 + $0x60] sm:$0xf]
      %v272 = vld [vmem:[%s246 + $0x64] sm:$0xf]
      %v273 = vld [vmem:[%s246 + $0x68] sm:$0x1]
      %v274 = vld [vmem:[%s246 + $0x6c] sm:$0xf]
      %v275 = vld [vmem:[%s246 + $0x70] sm:$0xf]
      %v276 = vld [vmem:[%s246 + $0x74] sm:$0x1]
      %v277 = vld [vmem:[%s246 + $0x78] sm:$0xf]
      %v278 = vld [vmem:[%s246 + $0x7c] sm:$0xf]
      %v279 = vld [vmem:[%s246 + $0x80] sm:$0x1]
      %v280 = vld [vmem:[%s246 + $0x84] sm:$0xf]
      %v281 = vld [vmem:[%s246 + $0x88] sm:$0xf]
      %v282 = vld [vmem:[%s246 + $0x8c] sm:$0x1]
      %v283 = vld [vmem:[%s246 + $0x90] sm:$0xf]
      %v284 = vld [vmem:[%s246 + $0x94] sm:$0xf]
      %v285 = vld [vmem:[%s246 + $0x98] sm:$0x1]
      %v286 = vld [vmem:[%s246 + $0x9c] sm:$0xf]
      %v287 = vld [vmem:[%s246 + $0xa0] sm:$0xf]
      %v288 = vld [vmem:[%s246 + $0xa4] sm:$0x1]
      %v289 = vld [vmem:[%s246 + $0xa8] sm:$0xf]
      %v290 = vld [vmem:[%s246 + $0xac] sm:$0xf]
      %v291 = vld [vmem:[%s246 + $0xb0] sm:$0x1]
      %v292 = vld [vmem:[%s246 + $0xb4] sm:$0xf]
      %v293 = vld [vmem:[%s246 + $0xb8] sm:$0xf]
      %v294 = vld [vmem:[%s246 + $0xbc] sm:$0x1]
      %v295 = vld [vmem:[%s246 + $0xc0] sm:$0xf]
      %v296 = vld [vmem:[%s246 + $0xc4] sm:$0xf]
      %v297 = vld [vmem:[%s246 + $0xc8] sm:$0x1]
      %v298 = vld [vmem:[%s246 + $0xcc] sm:$0xf]
      %v299 = vld [vmem:[%s246 + $0xd0] sm:$0xf]
      %v300 = vld [vmem:[%s246 + $0xd4] sm:$0x1]
      %v333 = vunpack.c.l.b16 %v247
      %v334 = vunpack.c.l.b16 %v248
      %v335 = vunpack.c.l.b16 %v250
      %v336 = vunpack.c.l.b16 %v251
      %v337 = vunpack.c.l.b16 %v253
      %v338 = vunpack.c.l.b16 %v254
      %v339 = vunpack.c.l.b16 %v256
      %v340 = vunpack.c.l.b16 %v257
      %v341 = vunpack.c.l.b16 %v259
      %v342 = vunpack.c.l.b16 %v260
      %v343 = vunpack.c.l.b16 %v262
      %v344 = vunpack.c.l.b16 %v263
      %v345 = vunpack.c.l.b16 %v265
      %v346 = vunpack.c.l.b16 %v266
      %v347 = vunpack.c.l.b16 %v268
      %v348 = vunpack.c.l.b16 %v269
      %v349 = vunpack.c.l.b16 %v271
      %v350 = vunpack.c.l.b16 %v272
      %v351 = vunpack.c.l.b16 %v274
      %v352 = vunpack.c.l.b16 %v275
      %v353 = vunpack.c.l.b16 %v277
      %v354 = vunpack.c.l.b16 %v278
      %v355 = vunpack.c.l.b16 %v280
      %v356 = vunpack.c.l.b16 %v281
      %v357 = vunpack.c.l.b16 %v283
      %v358 = vunpack.c.l.b16 %v284
      %v359 = vunpack.c.l.b16 %v286
      %v360 = vunpack.c.l.b16 %v287
      %v361 = vunpack.c.l.b16 %v289
      %v362 = vunpack.c.l.b16 %v290
      %v363 = vunpack.c.l.b16 %v292
      %v364 = vunpack.c.l.b16 %v293
      %v365 = vpack.c.b16 %v334, %v333
      %v366 = vpack.c.b16 %v336, %v335
      %v367 = vpack.c.b16 %v338, %v337
      %v368 = vpack.c.b16 %v340, %v339
      %v369 = vpack.c.b16 %v342, %v341
      %v370 = vpack.c.b16 %v344, %v343
      %v371 = vpack.c.b16 %v346, %v345
      %v372 = vpack.c.b16 %v348, %v347
      %v373 = vpack.c.b16 %v350, %v349
      %v374 = vpack.c.b16 %v352, %v351
      %v375 = vpack.c.b16 %v354, %v353
      %v376 = vpack.c.b16 %v356, %v355
      %v377 = vpack.c.b16 %v358, %v357
      %v378 = vpack.c.b16 %v360, %v359
      %v379 = vpack.c.b16 %v362, %v361
      %v380 = vpack.c.b16 %v364, %v363
      %v397 = vunpack.c.l.b16 %v249
      %v398 = vunpack.c.l.b16 %v252
      %v399 = vunpack.c.l.b16 %v255
      %v400 = vunpack.c.l.b16 %v258
      %v401 = vunpack.c.l.b16 %v261
      %v402 = vunpack.c.l.b16 %v264
      %v403 = vunpack.c.l.b16 %v267
      %v404 = vunpack.c.l.b16 %v270
      %v405 = vunpack.c.l.b16 %v273
      %v406 = vunpack.c.l.b16 %v276
      %v407 = vunpack.c.l.b16 %v279
      %v408 = vunpack.c.l.b16 %v282
      %v409 = vunpack.c.l.b16 %v285
      %v410 = vunpack.c.l.b16 %v288
      %v411 = vunpack.c.l.b16 %v291
      %v412 = vunpack.c.l.b16 %v294
      %v413 = vpack.c.b16 %v397, %v397
      %v414 = vpack.c.b16 %v398, %v398
      %v415 = vpack.c.b16 %v399, %v399
      %v416 = vpack.c.b16 %v400, %v400
      %v417 = vpack.c.b16 %v401, %v401
      %v418 = vpack.c.b16 %v402, %v402
      %v419 = vpack.c.b16 %v403, %v403
      %v420 = vpack.c.b16 %v404, %v404
      %v421 = vpack.c.b16 %v405, %v405
      %v422 = vpack.c.b16 %v406, %v406
      %v423 = vpack.c.b16 %v407, %v407
      %v424 = vpack.c.b16 %v408, %v408
      %v425 = vpack.c.b16 %v409, %v409
      %v426 = vpack.c.b16 %v410, %v410
      %v427 = vpack.c.b16 %v411, %v411
      %v428 = vpack.c.b16 %v412, %v412
      %vm429 = vsmask.f32 7424
      %v431 = vshrl.u32 %v365, 16
      %v433 = vshll.u32 %v365, 16
      %v435 = vrot.slane %v433, 1
      %v436 = vor.u32 %v431, %v435
      %v438 = vshll.u32 %v413, 16
      %v440 = vrot.slane %v438, 1
      %v441 = vsel %vm429, %v436, %v440
      %v443 = vshrl.u32 %v366, 16
      %v445 = vshll.u32 %v366, 16
      %v447 = vrot.slane %v445, 1
      %v448 = vor.u32 %v443, %v447
      %v450 = vshll.u32 %v414, 16
      %v452 = vrot.slane %v450, 1
      %v453 = vsel %vm429, %v448, %v452
      %v455 = vshrl.u32 %v367, 16
      %v457 = vshll.u32 %v367, 16
      %v459 = vrot.slane %v457, 1
      %v460 = vor.u32 %v455, %v459
      %v462 = vshll.u32 %v415, 16
      %v464 = vrot.slane %v462, 1
      %v465 = vsel %vm429, %v460, %v464
      %v467 = vshrl.u32 %v368, 16
      %v469 = vshll.u32 %v368, 16
      %v471 = vrot.slane %v469, 1
      %v472 = vor.u32 %v467, %v471
      %v474 = vshll.u32 %v416, 16
      %v476 = vrot.slane %v474, 1
      %v477 = vsel %vm429, %v472, %v476
      %v479 = vshrl.u32 %v369, 16
      %v481 = vshll.u32 %v369, 16
      %v483 = vrot.slane %v481, 1
      %v484 = vor.u32 %v479, %v483
      %v486 = vshll.u32 %v417, 16
      %v488 = vrot.slane %v486, 1
      %v489 = vsel %vm429, %v484, %v488
      %v491 = vshrl.u32 %v370, 16
      %v493 = vshll.u32 %v370, 16
      %v495 = vrot.slane %v493, 1
      %v496 = vor.u32 %v491, %v495
      %v498 = vshll.u32 %v418, 16
      %v500 = vrot.slane %v498, 1
      %v501 = vsel %vm429, %v496, %v500
      %v503 = vshrl.u32 %v371, 16
      %v505 = vshll.u32 %v371, 16
      %v507 = vrot.slane %v505, 1
      %v508 = vor.u32 %v503, %v507
      %v510 = vshll.u32 %v419, 16
      %v512 = vrot.slane %v510, 1
      %v513 = vsel %vm429, %v508, %v512
      %v515 = vshrl.u32 %v372, 16
      %v517 = vshll.u32 %v372, 16
      %v519 = vrot.slane %v517, 1
      %v520 = vor.u32 %v515, %v519
      %v522 = vshll.u32 %v420, 16
      %v524 = vrot.slane %v522, 1
      %v525 = vsel %vm429, %v520, %v524
      %v527 = vshrl.u32 %v373, 16
      %v529 = vshll.u32 %v373, 16
      %v531 = vrot.slane %v529, 1
      %v532 = vor.u32 %v527, %v531
      %v534 = vshll.u32 %v421, 16
      %v536 = vrot.slane %v534, 1
      %v537 = vsel %vm429, %v532, %v536
      %v539 = vshrl.u32 %v374, 16
      %v541 = vshll.u32 %v374, 16
      %v543 = vrot.slane %v541, 1
      %v544 = vor.u32 %v539, %v543
      %v546 = vshll.u32 %v422, 16
      %v548 = vrot.slane %v546, 1
      %v549 = vsel %vm429, %v544, %v548
      %v551 = vshrl.u32 %v375, 16
      %v553 = vshll.u32 %v375, 16
      %v555 = vrot.slane %v553, 1
      %v556 = vor.u32 %v551, %v555
      %v558 = vshll.u32 %v423, 16
      %v560 = vrot.slane %v558, 1
      %v561 = vsel %vm429, %v556, %v560
      %v563 = vshrl.u32 %v376, 16
      %v565 = vshll.u32 %v376, 16
      %v567 = vrot.slane %v565, 1
      %v568 = vor.u32 %v563, %v567
      %v570 = vshll.u32 %v424, 16
      %v572 = vrot.slane %v570, 1
      %v573 = vsel %vm429, %v568, %v572
      %v575 = vshrl.u32 %v377, 16
      %v577 = vshll.u32 %v377, 16
      %v579 = vrot.slane %v577, 1
      %v580 = vor.u32 %v575, %v579
      %v582 = vshll.u32 %v425, 16
      %v584 = vrot.slane %v582, 1
      %v585 = vsel %vm429, %v580, %v584
      %v587 = vshrl.u32 %v378, 16
      %v589 = vshll.u32 %v378, 16
      %v591 = vrot.slane %v589, 1
      %v592 = vor.u32 %v587, %v591
      %v594 = vshll.u32 %v426, 16
      %v596 = vrot.slane %v594, 1
      %v597 = vsel %vm429, %v592, %v596
      %v599 = vshrl.u32 %v379, 16
      %v601 = vshll.u32 %v379, 16
      %v603 = vrot.slane %v601, 1
      %v604 = vor.u32 %v599, %v603
      %v606 = vshll.u32 %v427, 16
      %v608 = vrot.slane %v606, 1
      %v609 = vsel %vm429, %v604, %v608
      %v611 = vshrl.u32 %v380, 16
      %v613 = vshll.u32 %v380, 16
      %v615 = vrot.slane %v613, 1
      %v616 = vor.u32 %v611, %v615
      %v618 = vshll.u32 %v428, 16
      %v620 = vrot.slane %v618, 1
      %v621 = vsel %vm429, %v616, %v620
      %622 = vrot.lane.b32.xlu0 %v441, 4
      %v623 = vpop.permute.xlu0 %622
      %624 = vrot.lane.b32.xlu0 %v453, 4
      %v625 = vpop.permute.xlu0 %624
      %626 = vrot.lane.b32.xlu0 %v465, 4
      %v627 = vpop.permute.xlu0 %626
      %628 = vrot.lane.b32.xlu0 %v477, 4
      %v629 = vpop.permute.xlu0 %628
      %630 = vrot.lane.b32.xlu0 %v489, 4
      %v631 = vpop.permute.xlu0 %630
      %632 = vrot.lane.b32.xlu0 %v501, 4
      %v633 = vpop.permute.xlu0 %632
      %634 = vrot.lane.b32.xlu0 %v513, 4
      %v635 = vpop.permute.xlu0 %634
      %636 = vrot.lane.b32.xlu0 %v525, 4
      %v637 = vpop.permute.xlu0 %636
      %638 = vrot.lane.b32.xlu0 %v537, 4
      %v639 = vpop.permute.xlu0 %638
      %640 = vrot.lane.b32.xlu0 %v549, 4
      %v641 = vpop.permute.xlu0 %640
      %642 = vrot.lane.b32.xlu0 %v561, 4
      %v643 = vpop.permute.xlu0 %642
      %644 = vrot.lane.b32.xlu0 %v573, 4
      %v645 = vpop.permute.xlu0 %644
      %646 = vrot.lane.b32.xlu0 %v585, 4
      %v647 = vpop.permute.xlu0 %646
      %648 = vrot.lane.b32.xlu0 %v597, 4
      %v649 = vpop.permute.xlu0 %648
      %650 = vrot.lane.b32.xlu0 %v609, 4
      %v651 = vpop.permute.xlu0 %650
      %652 = vrot.lane.b32.xlu0 %v621, 4
      %v653 = vpop.permute.xlu0 %652
      %vm654 = vcmask 1046528
      %v655 = vrot.slane %v365, 1
      %v656 = vrot.slane %v413, 1
      %v657 = vsel %vm654, %v655, %v656
      %v658 = vrot.slane %v366, 1
      %v659 = vrot.slane %v414, 1
      %v660 = vsel %vm654, %v658, %v659
      %v661 = vrot.slane %v367, 1
      %v662 = vrot.slane %v415, 1
      %v663 = vsel %vm654, %v661, %v662
      %v664 = vrot.slane %v368, 1
      %v665 = vrot.slane %v416, 1
      %v666 = vsel %vm654, %v664, %v665
      %v667 = vrot.slane %v369, 1
      %v668 = vrot.slane %v417, 1
      %v669 = vsel %vm654, %v667, %v668
      %v670 = vrot.slane %v370, 1
      %v671 = vrot.slane %v418, 1
      %v672 = vsel %vm654, %v670, %v671
      %v673 = vrot.slane %v371, 1
      %v674 = vrot.slane %v419, 1
      %v675 = vsel %vm654, %v673, %v674
      %v676 = vrot.slane %v372, 1
      %v677 = vrot.slane %v420, 1
      %v678 = vsel %vm654, %v676, %v677
      %v679 = vrot.slane %v373, 1
      %v680 = vrot.slane %v421, 1
      %v681 = vsel %vm654, %v679, %v680
      %v682 = vrot.slane %v374, 1
      %v683 = vrot.slane %v422, 1
      %v684 = vsel %vm654, %v682, %v683
      %v685 = vrot.slane %v375, 1
      %v686 = vrot.slane %v423, 1
      %v687 = vsel %vm654, %v685, %v686
      %v688 = vrot.slane %v376, 1
      %v689 = vrot.slane %v424, 1
      %v690 = vsel %vm654, %v688, %v689
      %v691 = vrot.slane %v377, 1
      %v692 = vrot.slane %v425, 1
      %v693 = vsel %vm654, %v691, %v692
      %v694 = vrot.slane %v378, 1
      %v695 = vrot.slane %v426, 1
      %v696 = vsel %vm654, %v694, %v695
      %v697 = vrot.slane %v379, 1
      %v698 = vrot.slane %v427, 1
      %v699 = vsel %vm654, %v697, %v698
      %v700 = vrot.slane %v380, 1
      %v701 = vrot.slane %v428, 1
      %v702 = vsel %vm654, %v700, %v701
      %703 = vrot.lane.b32.xlu0 %v657, 8
      %v704 = vpop.permute.xlu0 %703
      %705 = vrot.lane.b32.xlu0 %v660, 8
      %v706 = vpop.permute.xlu0 %705
      %707 = vrot.lane.b32.xlu0 %v663, 8
      %v708 = vpop.permute.xlu0 %707
      %709 = vrot.lane.b32.xlu0 %v666, 8
      %v710 = vpop.permute.xlu0 %709
      %711 = vrot.lane.b32.xlu0 %v669, 8
      %v712 = vpop.permute.xlu0 %711
      %713 = vrot.lane.b32.xlu0 %v672, 8
      %v714 = vpop.permute.xlu0 %713
      %715 = vrot.lane.b32.xlu0 %v675, 8
      %v716 = vpop.permute.xlu0 %715
      %717 = vrot.lane.b32.xlu0 %v678, 8
      %v718 = vpop.permute.xlu0 %717
      %719 = vrot.lane.b32.xlu0 %v681, 8
      %v720 = vpop.permute.xlu0 %719
      %721 = vrot.lane.b32.xlu0 %v684, 8
      %v722 = vpop.permute.xlu0 %721
      %723 = vrot.lane.b32.xlu0 %v687, 8
      %v724 = vpop.permute.xlu0 %723
      %725 = vrot.lane.b32.xlu0 %v690, 8
      %v726 = vpop.permute.xlu0 %725
      %727 = vrot.lane.b32.xlu0 %v693, 8
      %v728 = vpop.permute.xlu0 %727
      %729 = vrot.lane.b32.xlu0 %v696, 8
      %v730 = vpop.permute.xlu0 %729
      %731 = vrot.lane.b32.xlu0 %v699, 8
      %v732 = vpop.permute.xlu0 %731
      %733 = vrot.lane.b32.xlu0 %v702, 8
      %v734 = vpop.permute.xlu0 %733
      %vm735 = vcmask 31744
      %v737 = vsel %vm735, %v365, %v623
      %v739 = vsel %vm735, %v366, %v625
      %v741 = vsel %vm735, %v367, %v627
      %v743 = vsel %vm735, %v368, %v629
      %v745 = vsel %vm735, %v369, %v631
      %v747 = vsel %vm735, %v370, %v633
      %v749 = vsel %vm735, %v371, %v635
      %v751 = vsel %vm735, %v372, %v637
      %v753 = vsel %vm735, %v373, %v639
      %v755 = vsel %vm735, %v374, %v641
      %v757 = vsel %vm735, %v375, %v643
      %v759 = vsel %vm735, %v376, %v645
      %v761 = vsel %vm735, %v377, %v647
      %v763 = vsel %vm735, %v378, %v649
      %v765 = vsel %vm735, %v379, %v651
      %v767 = vsel %vm735, %v380, %v653
      %vm768 = vcmask 64512
      %v770 = vsel %vm768, %v737, %v704
      %v772 = vsel %vm768, %v739, %v706
      %v774 = vsel %vm768, %v741, %v708
      %v776 = vsel %vm768, %v743, %v710
      %v778 = vsel %vm768, %v745, %v712
      %v780 = vsel %vm768, %v747, %v714
      %v782 = vsel %vm768, %v749, %v716
      %v784 = vsel %vm768, %v751, %v718
      %v786 = vsel %vm768, %v753, %v720
      %v788 = vsel %vm768, %v755, %v722
      %v790 = vsel %vm768, %v757, %v724
      %v792 = vsel %vm768, %v759, %v726
      %v794 = vsel %vm768, %v761, %v728
      %v796 = vsel %vm768, %v763, %v730
      %v798 = vsel %vm768, %v765, %v732
      %v800 = vsel %vm768, %v767, %v734
      %v801 = vld [vmem:[%s224] sm:$0xf]
      %v802 = vld [vmem:[%s224 + $0x4] sm:$0x3]
      %v805 = vunpack.c.l.b16 %v295
      %v806 = vunpack.c.l.b16 %v296
      %v807 = vpack.c.b16 %v806, %v805
      %v809 = vunpack.c.l.b16 %v297
      %v810 = vpack.c.b16 %v809, %v809
      %v812 = vshrl.u32 %v807, 16
      %v814 = vshll.u32 %v807, 16
      %v816 = vrot.slane %v814, 1
      %v817 = vor.u32 %v812, %v816
      %v819 = vshll.u32 %v810, 16
      %v821 = vrot.slane %v819, 1
      %v822 = vsel %vm429, %v817, %v821
      %823 = vrot.lane.b32.xlu0 %v822, 4
      %v824 = vpop.permute.xlu0 %823
      %v825 = vrot.slane %v807, 1
      %v826 = vrot.slane %v810, 1
      %v827 = vsel %vm654, %v825, %v826
      %828 = vrot.lane.b32.xlu0 %v827, 8
      %v829 = vpop.permute.xlu0 %828
      %v831 = vsel %vm735, %v807, %v824
      %v833 = vsel %vm768, %v831, %v829
      %s834 = scalar_lea.vmem %s224, 8
      %v835 = vld [vmem:[%s834] sm:$0xf]
      %v836 = vld [vmem:[%s834 + $0x4] sm:$0x3]
      %v839 = vunpack.c.l.b16 %v835
      %v840 = vunpack.c.l.b16 %v836
      %v841 = vpack.c.b16 %v840, %v839
      %vm842 = vcmask 97280
      %v843 = vsel %vm842, %v772, 0
      %v845 = vsel %vm842, %v774, 0
      %v847 = vsel %vm842, %v776, 0
      %v849 = vsel %vm842, %v778, 0
      %v851 = vsel %vm842, %v780, 0
      %v853 = vsel %vm842, %v782, 0
      %v855 = vsel %vm842, %v784, 0
      %v857 = vsel %vm842, %v786, 0
      %v859 = vsel %vm842, %v788, 0
      %v861 = vsel %vm842, %v790, 0
      %v863 = vsel %vm842, %v792, 0
      %v865 = vsel %vm842, %v794, 0
      %v867 = vsel %vm842, %v796, 0
      %v869 = vsel %vm842, %v798, 0
      %v871 = vsel %vm842, %v800, 0
      %v873 = vsel %vm842, %v833, 0
      %vm875 = vcmask 1045504
      %v877 = vsel %vm875, %v841, 0
      %879 = vmatpush.bf16.msra.mxu0 0
      %880 = vmatpush.bf16.msra.mxu0 0
      %881 = vmatpush.bf16.msra.mxu0 0
      %882 = vmatpush.bf16.msra.mxu0 0
      %883 = vmatpush.bf16.msra.mxu0 0
      %884 = vmatpush.bf16.msra.mxu0 0
      %885 = vmatpush.bf16.msra.mxu0 0
      %886 = vmatpush.bf16.msra.mxu0 %v877
      %887 = vmatmul.bf16.gmra.mxu0 %v843
      %v888 = vpop.f32.mrf.mxu0
      %v889 = vadd.f32 0.0, %v888
      %v890 = vpop.f32.mrf.mxu0
      %v891 = vadd.f32 0.0, %v890
      %892 = vmatmul.bf16.gmra.mxu0 %v845
      %v893 = vpop.f32.mrf.mxu0
      %v894 = vadd.f32 0.0, %v893
      %v895 = vpop.f32.mrf.mxu0
      %v896 = vadd.f32 0.0, %v895
      %897 = vmatmul.bf16.gmra.mxu0 %v847
      %v898 = vpop.f32.mrf.mxu0
      %v899 = vadd.f32 0.0, %v898
      %v900 = vpop.f32.mrf.mxu0
      %v901 = vadd.f32 0.0, %v900
      %902 = vmatmul.bf16.gmra.mxu0 %v849
      %v903 = vpop.f32.mrf.mxu0
      %v904 = vadd.f32 0.0, %v903
      %v905 = vpop.f32.mrf.mxu0
      %v906 = vadd.f32 0.0, %v905
      %907 = vmatmul.bf16.gmra.mxu0 %v851
      %v908 = vpop.f32.mrf.mxu0
      %v909 = vadd.f32 0.0, %v908
      %v910 = vpop.f32.mrf.mxu0
      %v911 = vadd.f32 0.0, %v910
      %912 = vmatmul.bf16.gmra.mxu0 %v853
      %v913 = vpop.f32.mrf.mxu0
      %v914 = vadd.f32 0.0, %v913
      %v915 = vpop.f32.mrf.mxu0
      %v916 = vadd.f32 0.0, %v915
      %917 = vmatmul.bf16.gmra.mxu0 %v855
      %v918 = vpop.f32.mrf.mxu0
      %v919 = vadd.f32 0.0, %v918
      %v920 = vpop.f32.mrf.mxu0
      %v921 = vadd.f32 0.0, %v920
      %922 = vmatmul.bf16.gmra.mxu0 %v857
      %v923 = vpop.f32.mrf.mxu0
      %v924 = vadd.f32 0.0, %v923
      %v925 = vpop.f32.mrf.mxu0
      %v926 = vadd.f32 0.0, %v925
      %927 = vmatmul.bf16.gmra.mxu0 %v859
      %v928 = vpop.f32.mrf.mxu0
      %v929 = vadd.f32 0.0, %v928
      %v930 = vpop.f32.mrf.mxu0
      %v931 = vadd.f32 0.0, %v930
      %932 = vmatmul.bf16.gmra.mxu0 %v861
      %v933 = vpop.f32.mrf.mxu0
      %v934 = vadd.f32 0.0, %v933
      %v935 = vpop.f32.mrf.mxu0
      %v936 = vadd.f32 0.0, %v935
      %937 = vmatmul.bf16.gmra.mxu0 %v863
      %v938 = vpop.f32.mrf.mxu0
      %v939 = vadd.f32 0.0, %v938
      %v940 = vpop.f32.mrf.mxu0
      %v941 = vadd.f32 0.0, %v940
      %942 = vmatmul.bf16.gmra.mxu0 %v865
      %v943 = vpop.f32.mrf.mxu0
      %v944 = vadd.f32 0.0, %v943
      %v945 = vpop.f32.mrf.mxu0
      %v946 = vadd.f32 0.0, %v945
      %947 = vmatmul.bf16.gmra.mxu0 %v867
      %v948 = vpop.f32.mrf.mxu0
      %v949 = vadd.f32 0.0, %v948
      %v950 = vpop.f32.mrf.mxu0
      %v951 = vadd.f32 0.0, %v950
      %952 = vmatmul.bf16.gmra.mxu0 %v869
      %v953 = vpop.f32.mrf.mxu0
      %v954 = vadd.f32 0.0, %v953
      %v955 = vpop.f32.mrf.mxu0
      %v956 = vadd.f32 0.0, %v955
      %957 = vmatmul.bf16.gmra.mxu0 %v871
      %v958 = vpop.f32.mrf.mxu0
      %v959 = vadd.f32 0.0, %v958
      %v960 = vpop.f32.mrf.mxu0
      %v961 = vadd.f32 0.0, %v960
      %962 = vmatmul.bf16.gmra.mxu0 %v873
      %v963 = vpop.f32.mrf.mxu0
      %v964 = vadd.f32 0.0, %v963
      %v965 = vpop.f32.mrf.mxu0
      %v966 = vadd.f32 0.0, %v965
      %967 = vdwg.mxu0
      %v970 = vunpack.c.l.b16 %v801
      %v971 = vunpack.c.l.b16 %v802
      %v972 = vpack.c.b16 %v971, %v970
      %v973 = vsel %vm842, %v770, 0
      %v976 = vsel %vm875, %v972, 0
      %978 = vmatpush.bf16.msra.mxu0 0
      %979 = vmatpush.bf16.msra.mxu0 0
      %980 = vmatpush.bf16.msra.mxu0 0
      %981 = vmatpush.bf16.msra.mxu0 0
      %982 = vmatpush.bf16.msra.mxu0 0
      %983 = vmatpush.bf16.msra.mxu0 0
      %984 = vmatpush.bf16.msra.mxu0 0
      %985 = vmatpush.bf16.msra.mxu0 %v976
      %986 = vmatmul.bf16.gmra.mxu0 %v973
      %v987 = vpop.f32.mrf.mxu0
      %v988 = vadd.f32 %v889, %v987
      %v989 = vpop.f32.mrf.mxu0
      %v990 = vadd.f32 %v891, %v989
      %991 = vmatmul.bf16.gmra.mxu0 %v843
      %v992 = vpop.f32.mrf.mxu0
      %v993 = vadd.f32 %v894, %v992
      %v994 = vpop.f32.mrf.mxu0
      %v995 = vadd.f32 %v896, %v994
      %996 = vmatmul.bf16.gmra.mxu0 %v845
      %v997 = vpop.f32.mrf.mxu0
      %v998 = vadd.f32 %v899, %v997
      %v999 = vpop.f32.mrf.mxu0
      %v1000 = vadd.f32 %v901, %v999
      %1001 = vmatmul.bf16.gmra.mxu0 %v847
      %v1002 = vpop.f32.mrf.mxu0
      %v1003 = vadd.f32 %v904, %v1002
      %v1004 = vpop.f32.mrf.mxu0
      %v1005 = vadd.f32 %v906, %v1004
      %1006 = vmatmul.bf16.gmra.mxu0 %v849
      %v1007 = vpop.f32.mrf.mxu0
      %v1008 = vadd.f32 %v909, %v1007
      %v1009 = vpop.f32.mrf.mxu0
      %v1010 = vadd.f32 %v911, %v1009
      %1011 = vmatmul.bf16.gmra.mxu0 %v851
      %v1012 = vpop.f32.mrf.mxu0
      %v1013 = vadd.f32 %v914, %v1012
      %v1014 = vpop.f32.mrf.mxu0
      %v1015 = vadd.f32 %v916, %v1014
      %1016 = vmatmul.bf16.gmra.mxu0 %v853
      %v1017 = vpop.f32.mrf.mxu0
      %v1018 = vadd.f32 %v919, %v1017
      %v1019 = vpop.f32.mrf.mxu0
      %v1020 = vadd.f32 %v921, %v1019
      %1021 = vmatmul.bf16.gmra.mxu0 %v855
      %v1022 = vpop.f32.mrf.mxu0
      %v1023 = vadd.f32 %v924, %v1022
      %v1024 = vpop.f32.mrf.mxu0
      %v1025 = vadd.f32 %v926, %v1024
      %1026 = vmatmul.bf16.gmra.mxu0 %v857
      %v1027 = vpop.f32.mrf.mxu0
      %v1028 = vadd.f32 %v929, %v1027
      %v1029 = vpop.f32.mrf.mxu0
      %v1030 = vadd.f32 %v931, %v1029
      %1031 = vmatmul.bf16.gmra.mxu0 %v859
      %v1032 = vpop.f32.mrf.mxu0
      %v1033 = vadd.f32 %v934, %v1032
      %v1034 = vpop.f32.mrf.mxu0
      %v1035 = vadd.f32 %v936, %v1034
      %1036 = vmatmul.bf16.gmra.mxu0 %v861
      %v1037 = vpop.f32.mrf.mxu0
      %v1038 = vadd.f32 %v939, %v1037
      %v1039 = vpop.f32.mrf.mxu0
      %v1040 = vadd.f32 %v941, %v1039
      %1041 = vmatmul.bf16.gmra.mxu0 %v863
      %v1042 = vpop.f32.mrf.mxu0
      %v1043 = vadd.f32 %v944, %v1042
      %v1044 = vpop.f32.mrf.mxu0
      %v1045 = vadd.f32 %v946, %v1044
      %1046 = vmatmul.bf16.gmra.mxu0 %v865
      %v1047 = vpop.f32.mrf.mxu0
      %v1048 = vadd.f32 %v949, %v1047
      %v1049 = vpop.f32.mrf.mxu0
      %v1050 = vadd.f32 %v951, %v1049
      %1051 = vmatmul.bf16.gmra.mxu0 %v867
      %v1052 = vpop.f32.mrf.mxu0
      %v1053 = vadd.f32 %v954, %v1052
      %v1054 = vpop.f32.mrf.mxu0
      %v1055 = vadd.f32 %v956, %v1054
      %1056 = vmatmul.bf16.gmra.mxu0 %v869
      %v1057 = vpop.f32.mrf.mxu0
      %v1058 = vadd.f32 %v959, %v1057
      %v1059 = vpop.f32.mrf.mxu0
      %v1060 = vadd.f32 %v961, %v1059
      %1061 = vmatmul.bf16.gmra.mxu0 %v871
      %v1062 = vpop.f32.mrf.mxu0
      %v1063 = vadd.f32 %v964, %v1062
      %v1064 = vpop.f32.mrf.mxu0
      %v1065 = vadd.f32 %v966, %v1064
      %1066 = vdwg.mxu0
      %v1069 = vunpack.c.l.b16 %v298
      %v1070 = vunpack.c.l.b16 %v299
      %v1071 = vpack.c.b16 %v1070, %v1069
      %v1073 = vunpack.c.l.b16 %v300
      %v1074 = vpack.c.b16 %v1073, %v1073
      %v1076 = vshrl.u32 %v1071, 16
      %v1078 = vshll.u32 %v1071, 16
      %v1080 = vrot.slane %v1078, 1
      %v1081 = vor.u32 %v1076, %v1080
      %v1083 = vshll.u32 %v1074, 16
      %v1085 = vrot.slane %v1083, 1
      %v1086 = vsel %vm429, %v1081, %v1085
      %1087 = vrot.lane.b32.xlu0 %v1086, 4
      %v1088 = vpop.permute.xlu0 %1087
      %v1089 = vrot.slane %v1071, 1
      %v1090 = vrot.slane %v1074, 1
      %v1091 = vsel %vm654, %v1089, %v1090
      %1092 = vrot.lane.b32.xlu0 %v1091, 8
      %v1093 = vpop.permute.xlu0 %1092
      %v1095 = vsel %vm735, %v1071, %v1088
      %v1097 = vsel %vm768, %v1095, %v1093
      %s1098 = scalar_lea.vmem %s224, 16
      %v1099 = vld [vmem:[%s1098] sm:$0xf]
      %v1100 = vld [vmem:[%s1098 + $0x4] sm:$0x3]
      %v1103 = vunpack.c.l.b16 %v1099
      %v1104 = vunpack.c.l.b16 %v1100
      %v1105 = vpack.c.b16 %v1104, %v1103
      %v1106 = vsel %vm842, %v1097, 0
      %v1109 = vsel %vm875, %v1105, 0
      %1111 = vmatpush.bf16.msra.mxu0 0
      %1112 = vmatpush.bf16.msra.mxu0 0
      %1113 = vmatpush.bf16.msra.mxu0 0
      %1114 = vmatpush.bf16.msra.mxu0 0
      %1115 = vmatpush.bf16.msra.mxu0 0
      %1116 = vmatpush.bf16.msra.mxu0 0
      %1117 = vmatpush.bf16.msra.mxu0 0
      %1118 = vmatpush.bf16.msra.mxu0 %v1109
      %1119 = vmatmul.bf16.gmra.mxu0 %v845
      %v1120 = vpop.f32.mrf.mxu0
      %v1121 = vadd.f32 0.0, %v1120
      %v1122 = vpop.f32.mrf.mxu0
      %v1123 = vadd.f32 0.0, %v1122
      %1124 = vmatmul.bf16.gmra.mxu0 %v847
      %v1125 = vpop.f32.mrf.mxu0
      %v1126 = vadd.f32 0.0, %v1125
      %v1127 = vpop.f32.mrf.mxu0
      %v1128 = vadd.f32 0.0, %v1127
      %1129 = vmatmul.bf16.gmra.mxu0 %v849
      %v1130 = vpop.f32.mrf.mxu0
      %v1131 = vadd.f32 0.0, %v1130
      %v1132 = vpop.f32.mrf.mxu0
      %v1133 = vadd.f32 0.0, %v1132
      %1134 = vmatmul.bf16.gmra.mxu0 %v851
      %v1135 = vpop.f32.mrf.mxu0
      %v1136 = vadd.f32 0.0, %v1135
      %v1137 = vpop.f32.mrf.mxu0
      %v1138 = vadd.f32 0.0, %v1137
      %1139 = vmatmul.bf16.gmra.mxu0 %v853
      %v1140 = vpop.f32.mrf.mxu0
      %v1141 = vadd.f32 0.0, %v1140
      %v1142 = vpop.f32.mrf.mxu0
      %v1143 = vadd.f32 0.0, %v1142
      %1144 = vmatmul.bf16.gmra.mxu0 %v855
      %v1145 = vpop.f32.mrf.mxu0
      %v1146 = vadd.f32 0.0, %v1145
      %v1147 = vpop.f32.mrf.mxu0
      %v1148 = vadd.f32 0.0, %v1147
      %1149 = vmatmul.bf16.gmra.mxu0 %v857
      %v1150 = vpop.f32.mrf.mxu0
      %v1151 = vadd.f32 0.0, %v1150
      %v1152 = vpop.f32.mrf.mxu0
      %v1153 = vadd.f32 0.0, %v1152
      %1154 = vmatmul.bf16.gmra.mxu0 %v859
      %v1155 = vpop.f32.mrf.mxu0
      %v1156 = vadd.f32 0.0, %v1155
      %v1157 = vpop.f32.mrf.mxu0
      %v1158 = vadd.f32 0.0, %v1157
      %1159 = vmatmul.bf16.gmra.mxu0 %v861
      %v1160 = vpop.f32.mrf.mxu0
      %v1161 = vadd.f32 0.0, %v1160
      %v1162 = vpop.f32.mrf.mxu0
      %v1163 = vadd.f32 0.0, %v1162
      %1164 = vmatmul.bf16.gmra.mxu0 %v863
      %v1165 = vpop.f32.mrf.mxu0
      %v1166 = vadd.f32 0.0, %v1165
      %v1167 = vpop.f32.mrf.mxu0
      %v1168 = vadd.f32 0.0, %v1167
      %1169 = vmatmul.bf16.gmra.mxu0 %v865
      %v1170 = vpop.f32.mrf.mxu0
      %v1171 = vadd.f32 0.0, %v1170
      %v1172 = vpop.f32.mrf.mxu0
      %v1173 = vadd.f32 0.0, %v1172
      %1174 = vmatmul.bf16.gmra.mxu0 %v867
      %v1175 = vpop.f32.mrf.mxu0
      %v1176 = vadd.f32 0.0, %v1175
      %v1177 = vpop.f32.mrf.mxu0
      %v1178 = vadd.f32 0.0, %v1177
      %1179 = vmatmul.bf16.gmra.mxu0 %v869
      %v1180 = vpop.f32.mrf.mxu0
      %v1181 = vadd.f32 0.0, %v1180
      %v1182 = vpop.f32.mrf.mxu0
      %v1183 = vadd.f32 0.0, %v1182
      %1184 = vmatmul.bf16.gmra.mxu0 %v871
      %v1185 = vpop.f32.mrf.mxu0
      %v1186 = vadd.f32 0.0, %v1185
      %v1187 = vpop.f32.mrf.mxu0
      %v1188 = vadd.f32 0.0, %v1187
      %1189 = vmatmul.bf16.gmra.mxu0 %v873
      %v1190 = vpop.f32.mrf.mxu0
      %v1191 = vadd.f32 0.0, %v1190
      %v1192 = vpop.f32.mrf.mxu0
      %v1193 = vadd.f32 0.0, %v1192
      %1194 = vmatmul.bf16.gmra.mxu0 %v1106
      %v1195 = vpop.f32.mrf.mxu0
      %v1196 = vadd.f32 0.0, %v1195
      %v1197 = vpop.f32.mrf.mxu0
      %v1198 = vadd.f32 0.0, %v1197
      %1199 = vdwg.mxu0
      %v1200 = vadd.f32 %v988, %v1121
      %v1201 = vadd.f32 %v990, %v1123
      %v1202 = vadd.f32 %v993, %v1126
      %v1203 = vadd.f32 %v995, %v1128
      %v1204 = vadd.f32 %v998, %v1131
      %v1205 = vadd.f32 %v1000, %v1133
      %v1206 = vadd.f32 %v1003, %v1136
      %v1207 = vadd.f32 %v1005, %v1138
      %v1208 = vadd.f32 %v1008, %v1141
      %v1209 = vadd.f32 %v1010, %v1143
      %v1210 = vadd.f32 %v1013, %v1146
      %v1211 = vadd.f32 %v1015, %v1148
      %v1212 = vadd.f32 %v1018, %v1151
      %v1213 = vadd.f32 %v1020, %v1153
      %v1214 = vadd.f32 %v1023, %v1156
      %v1215 = vadd.f32 %v1025, %v1158
      %v1216 = vadd.f32 %v1028, %v1161
      %v1217 = vadd.f32 %v1030, %v1163
      %v1218 = vadd.f32 %v1033, %v1166
      %v1219 = vadd.f32 %v1035, %v1168
      %v1220 = vadd.f32 %v1038, %v1171
      %v1221 = vadd.f32 %v1040, %v1173
      %v1222 = vadd.f32 %v1043, %v1176
      %v1223 = vadd.f32 %v1045, %v1178
      %v1224 = vadd.f32 %v1048, %v1181
      %v1225 = vadd.f32 %v1050, %v1183
      %v1226 = vadd.f32 %v1053, %v1186
      %v1227 = vadd.f32 %v1055, %v1188
      %v1228 = vadd.f32 %v1058, %v1191
      %v1229 = vadd.f32 %v1060, %v1193
      %v1230 = vadd.f32 %v1063, %v1196
      %v1231 = vadd.f32 %v1065, %v1198
      %v1232 = vld [vmem:[%s227] sm:$0x1]
      %v1234 = vperm.slane %v1232, 0
      %v1236 = vadd.f32 %v1200, %v1234
      %v1237 = vadd.f32 %v1201, %v1234
      %v1238 = vadd.f32 %v1202, %v1234
      %v1239 = vadd.f32 %v1203, %v1234
      %v1240 = vadd.f32 %v1204, %v1234
      %v1241 = vadd.f32 %v1205, %v1234
      %v1242 = vadd.f32 %v1206, %v1234
      %v1243 = vadd.f32 %v1207, %v1234
      %v1244 = vadd.f32 %v1208, %v1234
      %v1245 = vadd.f32 %v1209, %v1234
      %v1246 = vadd.f32 %v1210, %v1234
      %v1247 = vadd.f32 %v1211, %v1234
      %v1248 = vadd.f32 %v1212, %v1234
      %v1249 = vadd.f32 %v1213, %v1234
      %v1250 = vadd.f32 %v1214, %v1234
      %v1251 = vadd.f32 %v1215, %v1234
      %v1252 = vadd.f32 %v1216, %v1234
      %v1253 = vadd.f32 %v1217, %v1234
      %v1254 = vadd.f32 %v1218, %v1234
      %v1255 = vadd.f32 %v1219, %v1234
      %v1256 = vadd.f32 %v1220, %v1234
      %v1257 = vadd.f32 %v1221, %v1234
      %v1258 = vadd.f32 %v1222, %v1234
      %v1259 = vadd.f32 %v1223, %v1234
      %v1260 = vadd.f32 %v1224, %v1234
      %v1261 = vadd.f32 %v1225, %v1234
      %v1262 = vadd.f32 %v1226, %v1234
      %v1263 = vadd.f32 %v1227, %v1234
      %v1264 = vadd.f32 %v1228, %v1234
      %v1265 = vadd.f32 %v1229, %v1234
      %v1266 = vadd.f32 %v1230, %v1234
      %v1267 = vadd.f32 %v1231, %v1234
      %v1268 = vmax.f32 %v1236, 0.0
      %v1269 = vmax.f32 %v1237, 0.0
      %v1270 = vmax.f32 %v1238, 0.0
      %v1271 = vmax.f32 %v1239, 0.0
      %v1272 = vmax.f32 %v1240, 0.0
      %v1273 = vmax.f32 %v1241, 0.0
      %v1274 = vmax.f32 %v1242, 0.0
      %v1275 = vmax.f32 %v1243, 0.0
      %v1276 = vmax.f32 %v1244, 0.0
      %v1277 = vmax.f32 %v1245, 0.0
      %v1278 = vmax.f32 %v1246, 0.0
      %v1279 = vmax.f32 %v1247, 0.0
      %v1280 = vmax.f32 %v1248, 0.0
      %v1281 = vmax.f32 %v1249, 0.0
      %v1282 = vmax.f32 %v1250, 0.0
      %v1283 = vmax.f32 %v1251, 0.0
      %v1284 = vmax.f32 %v1252, 0.0
      %v1285 = vmax.f32 %v1253, 0.0
      %v1286 = vmax.f32 %v1254, 0.0
      %v1287 = vmax.f32 %v1255, 0.0
      %v1288 = vmax.f32 %v1256, 0.0
      %v1289 = vmax.f32 %v1257, 0.0
      %v1290 = vmax.f32 %v1258, 0.0
      %v1291 = vmax.f32 %v1259, 0.0
      %v1292 = vmax.f32 %v1260, 0.0
      %v1293 = vmax.f32 %v1261, 0.0
      %v1294 = vmax.f32 %v1262, 0.0
      %v1295 = vmax.f32 %v1263, 0.0
      %v1296 = vmax.f32 %v1264, 0.0
      %v1297 = vmax.f32 %v1265, 0.0
      %v1298 = vmax.f32 %v1266, 0.0
      %v1299 = vmax.f32 %v1267, 0.0
      %v1300 = vpack.c.bf16 %v1268, %v1268
      %v1301 = vpack.c.bf16 %v1269, %v1269
      %v1302 = vpack.c.bf16 %v1270, %v1270
      %v1303 = vpack.c.bf16 %v1271, %v1271
      %v1304 = vpack.c.bf16 %v1272, %v1272
      %v1305 = vpack.c.bf16 %v1273, %v1273
      %v1306 = vpack.c.bf16 %v1274, %v1274
      %v1307 = vpack.c.bf16 %v1275, %v1275
      %v1308 = vpack.c.bf16 %v1276, %v1276
      %v1309 = vpack.c.bf16 %v1277, %v1277
      %v1310 = vpack.c.bf16 %v1278, %v1278
      %v1311 = vpack.c.bf16 %v1279, %v1279
      %v1312 = vpack.c.bf16 %v1280, %v1280
      %v1313 = vpack.c.bf16 %v1281, %v1281
      %v1314 = vpack.c.bf16 %v1282, %v1282
      %v1315 = vpack.c.bf16 %v1283, %v1283
      %v1316 = vpack.c.bf16 %v1284, %v1284
      %v1317 = vpack.c.bf16 %v1285, %v1285
      %v1318 = vpack.c.bf16 %v1286, %v1286
      %v1319 = vpack.c.bf16 %v1287, %v1287
      %v1320 = vpack.c.bf16 %v1288, %v1288
      %v1321 = vpack.c.bf16 %v1289, %v1289
      %v1322 = vpack.c.bf16 %v1290, %v1290
      %v1323 = vpack.c.bf16 %v1291, %v1291
      %v1324 = vpack.c.bf16 %v1292, %v1292
      %v1325 = vpack.c.bf16 %v1293, %v1293
      %v1326 = vpack.c.bf16 %v1294, %v1294
      %v1327 = vpack.c.bf16 %v1295, %v1295
      %v1328 = vpack.c.bf16 %v1296, %v1296
      %v1329 = vpack.c.bf16 %v1297, %v1297
      %v1330 = vpack.c.bf16 %v1298, %v1298
      %v1331 = vpack.c.bf16 %v1299, %v1299
      %vm1332 = vcmask 60416
      %1333 = vst.msk [vmem:[%s240] sm:$0xf] %vm1332, %v1300
      %1334 = vst.msk [vmem:[%s240 + $0x4] sm:$0xf] %vm1332, %v1301
      %1335 = vst.msk [vmem:[%s240 + $0x8] sm:$0xf] %vm1332, %v1302
      %1336 = vst.msk [vmem:[%s240 + $0xc] sm:$0xf] %vm1332, %v1303
      %1337 = vst.msk [vmem:[%s240 + $0x10] sm:$0xf] %vm1332, %v1304
      %1338 = vst.msk [vmem:[%s240 + $0x14] sm:$0xf] %vm1332, %v1305
      %1339 = vst.msk [vmem:[%s240 + $0x18] sm:$0xf] %vm1332, %v1306
      %1340 = vst.msk [vmem:[%s240 + $0x1c] sm:$0xf] %vm1332, %v1307
      %1341 = vst.msk [vmem:[%s240 + $0x20] sm:$0xf] %vm1332, %v1308
      %1342 = vst.msk [vmem:[%s240 + $0x24] sm:$0xf] %vm1332, %v1309
      %1343 = vst.msk [vmem:[%s240 + $0x28] sm:$0xf] %vm1332, %v1310
      %1344 = vst.msk [vmem:[%s240 + $0x2c] sm:$0xf] %vm1332, %v1311
      %1345 = vst.msk [vmem:[%s240 + $0x30] sm:$0xf] %vm1332, %v1312
      %1346 = vst.msk [vmem:[%s240 + $0x34] sm:$0xf] %vm1332, %v1313
      %1347 = vst.msk [vmem:[%s240 + $0x38] sm:$0xf] %vm1332, %v1314
      %1348 = vst.msk [vmem:[%s240 + $0x3c] sm:$0xf] %vm1332, %v1315
      %1349 = vst.msk [vmem:[%s240 + $0x40] sm:$0xf] %vm1332, %v1316
      %1350 = vst.msk [vmem:[%s240 + $0x44] sm:$0xf] %vm1332, %v1317
      %1351 = vst.msk [vmem:[%s240 + $0x48] sm:$0xf] %vm1332, %v1318
      %1352 = vst.msk [vmem:[%s240 + $0x4c] sm:$0xf] %vm1332, %v1319
      %1353 = vst.msk [vmem:[%s240 + $0x50] sm:$0xf] %vm1332, %v1320
      %1354 = vst.msk [vmem:[%s240 + $0x54] sm:$0xf] %vm1332, %v1321
      %1355 = vst.msk [vmem:[%s240 + $0x58] sm:$0xf] %vm1332, %v1322
      %1356 = vst.msk [vmem:[%s240 + $0x5c] sm:$0xf] %vm1332, %v1323
      %1357 = vst.msk [vmem:[%s240 + $0x60] sm:$0xf] %vm1332, %v1324
      %1358 = vst.msk [vmem:[%s240 + $0x64] sm:$0xf] %vm1332, %v1325
      %1359 = vst.msk [vmem:[%s240 + $0x68] sm:$0xf] %vm1332, %v1326
      %1360 = vst.msk [vmem:[%s240 + $0x6c] sm:$0xf] %vm1332, %v1327
      %1361 = vst.msk [vmem:[%s240 + $0x70] sm:$0xf] %vm1332, %v1328
      %1362 = vst.msk [vmem:[%s240 + $0x74] sm:$0xf] %vm1332, %v1329
      %1363 = vst.msk [vmem:[%s240 + $0x78] sm:$0xf] %vm1332, %v1330
      %1364 = vst.msk [vmem:[%s240 + $0x7c] sm:$0xf] %vm1332, %v1331
      %s1365 = smul.u32 16, %s21
      %p1366 = scmp.lt.s32.totalorder %s19, 1
      %s1367 = scalar_select %p1366, %s19, 1
      %p1368 = scmp.lt.s32.totalorder %s1365, 15
      %s1369 = scalar_select %p1368, %s1365, 15
      %p1370 = scmp.lt.s32.totalorder %s20, 0
      %s1371 = scalar_select %p1370, %s20, 0
      %s1372 = smul.addr %s1369, 2
      %s1373 = sadd.s32 %s1371, %s1372
      %s1374 = smul.addr %s1367, 32
      %s1375 = sadd.s32 %s1373, %s1374
      %s1376 = smul.addr %s1375, 4
      %s1377 = scalar_lea.vmem %s3, %s1376
      // Predicated region
      $region33: #{tpu_custom_call.1} parent=31 // pred_check
        %p1378 = pneg %p133
      $region34: #{tpu_custom_call.1} parent=31 // pred_check_branch
        %1380 = sbr.rel (%p1378) target = $region36
      $region35: #{tpu_custom_call.1} parent=31 // pred_region
        %s1381 = smul.u32 16, %s21
      $region36: #{tpu_custom_call.1} parent=31 // pred_fallthru
        _
    $region32: #{tpu_custom_call.1} parent=5 // pred_fallthru
      _
    %p1382 = scmp.le.s32.totalorder 2, %s9
    // Predicated region
    $region37: #{tpu_custom_call.1} parent=5 // pred_check
      %p1383 = pneg %p1382
    $region38: #{tpu_custom_call.1} parent=5 // pred_check_branch
      %1385 = sbr.rel (%p1383) target = $region40
    $region39: #{tpu_custom_call.1} parent=5 // pred_region
      %s1386 = ssub.s32 %s9, 2
      // Predicated region
      $region41: #{tpu_custom_call.1} parent=39 // pred_check
        %p1387 = pneg %p139
      $region42: #{tpu_custom_call.1} parent=39 // pred_check_branch
        %1389 = sbr.rel (%p1387) target = $region44
      $region43: #{tpu_custom_call.1} parent=39 // pred_region
        %s1390 = smul.u32 16, %s24
        %p1391 = scmp.lt.s32.totalorder %s22, 1
        %s1392 = scalar_select %p1391, %s22, 1
        %p1393 = scmp.lt.s32.totalorder %s1390, 15
        %s1394 = scalar_select %p1393, %s1390, 15
        %p1395 = scmp.lt.s32.totalorder %s23, 0
        %s1396 = scalar_select %p1395, %s23, 0
        %s1397 = smul.addr %s1394, 2
        %s1398 = sadd.s32 %s1396, %s1397
        %s1399 = smul.addr %s1392, 32
        %s1400 = sadd.s32 %s1398, %s1399
        %s1401 = smul.addr %s1400, 4
        %s1402 = scalar_lea.vmem %s3, %s1401
      $region44: #{tpu_custom_call.1} parent=39 // pred_fallthru
        _
    $region40: #{tpu_custom_call.1} parent=5 // pred_fallthru
      _
  $region6: #{tpu_custom_call.1} parent=0 // loop_footer
    %s13 = sadd.s32 1, %s9
  $region7: #{tpu_custom_call.1} parent=0 // loop_footer_branch
    %8 = sbr.rel target = $region3
  $region8: #{tpu_custom_call.1} parent=0 // loop_exit
    _

</llo_original>
